<compile_context>
chip_gen: v6e
topology: v6e:2x2x1
jax: 0.10.0
libtpu: 0.0.40
codegen_flags: <defaults>
</compile_context>

<pallas_src>
import jax
import jax.numpy as jnp
from jax.experimental import pallas as pl
from jax.experimental.pallas import tpu as pltpu

_LANE = 128
_SUBLANE = 8


def _round_up(x: int, m: int) -> int:
    return (x + m - 1) // m * m


def _tpu_vmem_capacity_bytes() -> int:
    """Per-core VMEM capacity; conservative 64 MiB (v7x) fallback."""
    try:
        return int(pltpu.get_tpu_info().vmem_capacity_bytes)
    except Exception:
        return 64 * 1024 * 1024


def _vmem_footprint_bytes(tb, f_in_p, f_out_p, compute_bytes, out_bytes,
                          weight_bufs):
    weights = (f_in_p * f_out_p + f_out_p * f_out_p) * compute_bytes * weight_bufs
    biases = 2 * _SUBLANE * f_out_p * 4 * weight_bufs
    x_tiles = 2 * tb * f_in_p * compute_bytes       # double-buffered activations
    out_tiles = 2 * tb * f_out_p * out_bytes        # double-buffered output
    hidden = 2 * tb * f_out_p * 4                   # f32 hidden + f32 2nd-dot acc
    return weights + biases + x_tiles + out_tiles + hidden


def _mlp_kernel(x_ref, w1_ref, b1_ref, w2_ref, b2_ref, o_ref):
    # h = relu(x @ W1 + b1)   (MXU matmul, f32 accumulation)
    h = jnp.dot(x_ref[...], w1_ref[...], preferred_element_type=jnp.float32)
    h = jnp.maximum(h + b1_ref[0:1, :], 0.0)
    # y = h @ W2 + b2
    h = h.astype(w2_ref.dtype)
    y = jnp.dot(h, w2_ref[...], preferred_element_type=jnp.float32)
    o_ref[...] = (y + b2_ref[0:1, :]).astype(o_ref.dtype)


def prepare_params(w1, b1, w2, b2, *, compute_dtype=jnp.float32):
    """One-time lane-dense (128-multiple) padding + cast of the parameters.

    Do this once at init; the per-call forward then does zero weight copies.
    Zero padding keeps semantics exact: padded x columns hit zero W1 rows,
    padded hidden columns are relu(0+0)=0 and hit zero W2 rows, and padded
    output columns are sliced off in the forward.
    """
    f_in, f_out = w1.shape
    f_in_p = _round_up(f_in, _LANE)
    f_out_p = _round_up(f_out, _LANE)

    w1_p = jnp.pad(w1, ((0, f_in_p - f_in), (0, f_out_p - f_out))).astype(compute_dtype)
    w2_p = jnp.pad(w2, ((0, f_out_p - f_out), (0, f_out_p - f_out))).astype(compute_dtype)
    b1_p = jnp.pad(b1, (0, f_out_p - f_out)).astype(jnp.float32)
    b2_p = jnp.pad(b2, (0, f_out_p - f_out)).astype(jnp.float32)
    # Biases as full (8, F_out_p) tiles -> clean full-sublane DMA.
    b1_t = jnp.broadcast_to(b1_p[None, :], (_SUBLANE, f_out_p))
    b2_t = jnp.broadcast_to(b2_p[None, :], (_SUBLANE, f_out_p))

    return dict(w1=w1_p, b1=b1_t, w2=w2_p, b2=b2_t,
                f_in=f_in, f_out=f_out, f_in_p=f_in_p, f_out_p=f_out_p,
                compute_dtype=compute_dtype)


def context_analyzer_forward(x, params, *, out_dtype=None, max_batch_tile=512):
    """Fused two-layer MLP forward: relu(x @ W1 + b1) @ W2 + b2.

    x: (B, F_in). `params` comes from prepare_params().
    Returns (B, F_out) in out_dtype (defaults to compute dtype).
    """
    B, f_in = x.shape
    assert f_in == params["f_in"], "feature size mismatch with prepared params"
    f_in_p, f_out_p, f_out = params["f_in_p"], params["f_out_p"], params["f_out"]
    compute_dtype = params["compute_dtype"]
    out_dtype = compute_dtype if out_dtype is None else out_dtype

    compute_bytes = jnp.dtype(compute_dtype).itemsize
    out_bytes = jnp.dtype(out_dtype).itemsize

    # --- batch tiling: TB rows per grid step, sized to the device's VMEM ---
    vmem_cap = _tpu_vmem_capacity_bytes()
    budget = int(0.70 * vmem_cap)
    TB = max(_SUBLANE, min(max_batch_tile, _round_up(B, _SUBLANE)))
    while TB > _SUBLANE and _vmem_footprint_bytes(
            TB, f_in_p, f_out_p, compute_bytes, out_bytes, 1) > budget:
        TB = max(_SUBLANE, _round_up(TB // 2, _SUBLANE))
    B_p = _round_up(B, TB)
    num_tiles = B_p // TB

    # --- activations: fast path when already aligned (no extra HBM copy) ---
    if B_p != B or f_in_p != f_in:
        x_p = jnp.pad(x, ((0, B_p - B), (0, f_in_p - f_in)))
    else:
        x_p = x
    if x_p.dtype != compute_dtype:
        x_p = x_p.astype(compute_dtype)

    footprint = _vmem_footprint_bytes(TB, f_in_p, f_out_p, compute_bytes,
                                      out_bytes, 1)
    vmem_limit = int(min(vmem_cap, max(int(footprint * 1.25), 32 * 1024 * 1024)))

    def _call(single_buffer_weights):
        if single_buffer_weights:
            def wspec(shape):
                return pl.BlockSpec(shape, lambda i: (0, 0),
                                    pipeline_mode=pl.Buffered(1))
        else:
            def wspec(shape):
                return pl.BlockSpec(shape, lambda i: (0, 0))

        grid_spec = pl.GridSpec(
            grid=(num_tiles,),
            in_specs=[
                # activations: tiled over batch, double-buffered by Pallas
                pl.BlockSpec((TB, f_in_p), lambda i: (i, 0)),
                # weights/biases: constant block -> VMEM-resident, single buf
                wspec((f_in_p, f_out_p)),
                wspec((_SUBLANE, f_out_p)),
                wspec((f_out_p, f_out_p)),
                wspec((_SUBLANE, f_out_p)),
            ],
            out_specs=pl.BlockSpec((TB, f_out_p), lambda i: (i, 0)),
        )
        return pl.pallas_call(
            _mlp_kernel,
            out_shape=jax.ShapeDtypeStruct((B_p, f_out_p), out_dtype),
            grid_spec=grid_spec,
            compiler_params=pltpu.CompilerParams(
                # batch tiles are independent -> megacore sharding on v7x
                dimension_semantics=("parallel",),
                vmem_limit_bytes=vmem_limit,
            ),
        )(x_p, params["w1"], params["b1"], params["w2"], params["b2"])

    try:
        out_p = _call(True)
    except Exception:
        # Fallback for jax versions that reject Buffered(1) on pallas_call specs.
        out_p = _call(False)

    if B_p != B or f_out_p != f_out:
        out_p = out_p[:B, :f_out]
    return out_p


def init_params(key, input_feature_size, output_feature_size):
    """Deterministic parameter init (PyTorch-Linear-style uniform bounds)."""
    k1, k2, k3, k4 = jax.random.split(key, 4)
    bound1 = 1.0 / jnp.sqrt(input_feature_size)
    bound2 = 1.0 / jnp.sqrt(output_feature_size)
    # Stored already transposed: (in, out) so the kernel computes x @ W.
    w1 = jax.random.uniform(k1, (input_feature_size, output_feature_size),
                            jnp.float32, -bound1, bound1)
    b1 = jax.random.uniform(k2, (output_feature_size,), jnp.float32,
                            -bound1, bound1)
    w2 = jax.random.uniform(k3, (output_feature_size, output_feature_size),
                            jnp.float32, -bound2, bound2)
    b2 = jax.random.uniform(k4, (output_feature_size,), jnp.float32,
                            -bound2, bound2)
    return w1, b1, w2, b2


if __name__ == "__main__":
    key = jax.random.PRNGKey(0)
    k_x, k_p = jax.random.split(key)

    batch = 8
    input_feature_size = 32
    output_feature_size = 32

    x = jax.random.normal(k_x, (batch, input_feature_size), jnp.float32)
    w1, b1, w2, b2 = init_params(k_p, input_feature_size, output_feature_size)

    # Pad/cast the weights once (outside the per-call forward path).
    params = prepare_params(w1, b1, w2, b2, compute_dtype=jnp.float32)

    out = context_analyzer_forward(x, params)
    out = jax.block_until_ready(out)

    # Pure-JAX reference of the same forward semantics.
    ref = jnp.maximum(x @ w1 + b1, 0.0) @ w2 + b2
    assert out.shape == (batch, output_feature_size)
    assert out.dtype == jnp.float32
    assert jnp.allclose(out, ref, atol=1e-5, rtol=1e-5)

    print("KERNEL_OK")
</pallas_src>

<mosaic_0001>
module attributes {stable_mosaic.version = 11 : i64} {
  func.func @_mlp_kernel(%arg0: i32, %arg1: memref<8x128xf32, #tpu.memory_space<vmem>>, %arg2: memref<128x128xf32, #tpu.memory_space<vmem>>, %arg3: memref<8x128xf32, #tpu.memory_space<vmem>>, %arg4: memref<128x128xf32, #tpu.memory_space<vmem>>, %arg5: memref<8x128xf32, #tpu.memory_space<vmem>>, %arg6: memref<8x128xf32, #tpu.memory_space<vmem>>) attributes {dimension_semantics = [#tpu.dimension_semantics<parallel>], iteration_bounds = array<i64: 1>, scalar_prefetch = 0 : i64, scratch_operands = 0 : i64, tpu.core_type = #tpu.core_type<tc>, window_params = [{transform_indices = @transform_0, window_bounds = array<i64: 8, 128>}, {pipeline_mode = #tpu.pipeline_mode<synchronous>, transform_indices = @transform_1, window_bounds = array<i64: 128, 128>}, {pipeline_mode = #tpu.pipeline_mode<synchronous>, transform_indices = @transform_2, window_bounds = array<i64: 8, 128>}, {pipeline_mode = #tpu.pipeline_mode<synchronous>, transform_indices = @transform_3, window_bounds = array<i64: 128, 128>}, {pipeline_mode = #tpu.pipeline_mode<synchronous>, transform_indices = @transform_4, window_bounds = array<i64: 8, 128>}, {transform_indices = @transform_5, window_bounds = array<i64: 8, 128>}]} {
    %c0 = arith.constant 0 : index
    %c0_0 = arith.constant 0 : index
    %0 = vector.load %arg1[%c0, %c0_0] : memref<8x128xf32, #tpu.memory_space<vmem>>, vector<8x128xf32>
    %c0_1 = arith.constant 0 : index
    %c0_2 = arith.constant 0 : index
    %1 = vector.load %arg2[%c0_1, %c0_2] : memref<128x128xf32, #tpu.memory_space<vmem>>, vector<128x128xf32>
    %cst = arith.constant dense<0.000000e+00> : vector<8x128xf32>
    %2 = tpu.matmul %0, %1, %cst {dimension_numbers = #tpu.dot_dimension_numbers<[1], [0], [0], [1], [0, 0, 1, 1], [], []>} : vector<8x128xf32>, vector<128x128xf32>, vector<8x128xf32> -> vector<8x128xf32>
    %c0_3 = arith.constant 0 : index
    %c0_4 = arith.constant 0 : index
    %3 = vector.load %arg3[%c0_3, %c0_4] : memref<8x128xf32, #tpu.memory_space<vmem>>, vector<1x128xf32>
    %4 = vector.broadcast %3 : vector<1x128xf32> to vector<8x128xf32>
    %5 = arith.addf %2, %4 : vector<8x128xf32>
    %cst_5 = arith.constant 0.000000e+00 : f32
    %6 = vector.broadcast %cst_5 : f32 to vector<8x128xf32>
    %7 = arith.maximumf %5, %6 : vector<8x128xf32>
    %c0_6 = arith.constant 0 : index
    %c0_7 = arith.constant 0 : index
    %8 = vector.load %arg4[%c0_6, %c0_7] : memref<128x128xf32, #tpu.memory_space<vmem>>, vector<128x128xf32>
    %cst_8 = arith.constant dense<0.000000e+00> : vector<8x128xf32>
    %9 = tpu.matmul %7, %8, %cst_8 {dimension_numbers = #tpu.dot_dimension_numbers<[1], [0], [0], [1], [0, 0, 1, 1], [], []>} : vector<8x128xf32>, vector<128x128xf32>, vector<8x128xf32> -> vector<8x128xf32>
    %c0_9 = arith.constant 0 : index
    %c0_10 = arith.constant 0 : index
    %10 = vector.load %arg5[%c0_9, %c0_10] : memref<8x128xf32, #tpu.memory_space<vmem>>, vector<1x128xf32>
    %11 = vector.broadcast %10 : vector<1x128xf32> to vector<8x128xf32>
    %12 = arith.addf %9, %11 : vector<8x128xf32>
    %c0_11 = arith.constant 0 : index
    %c0_12 = arith.constant 0 : index
    %13 = vector.load %arg6[%c0_11, %c0_12] : memref<8x128xf32, #tpu.memory_space<vmem>>, vector<8x128xf32>
    tpu.vector_store %arg6[%c0_11, %c0_12], %12 {strides = array<i32>} : memref<8x128xf32, #tpu.memory_space<vmem>>, vector<8x128xf32>,
    return
  }
  func.func @transform_0(%arg0: i32) -> (i32, i32) {
    %c0_i32 = arith.constant 0 : i32
    %c0_i32_0 = arith.constant 0 : i32
    return %arg0, %c0_i32 : i32, i32
  }
  func.func @transform_1(%arg0: i32) -> (i32, i32) {
    %c0_i32 = arith.constant 0 : i32
    %c0_i32_0 = arith.constant 0 : i32
    %c0_i32_1 = arith.constant 0 : i32
    return %c0_i32, %c0_i32_0 : i32, i32
  }
  func.func @transform_2(%arg0: i32) -> (i32, i32) {
    %c0_i32 = arith.constant 0 : i32
    %c0_i32_0 = arith.constant 0 : i32
    %c0_i32_1 = arith.constant 0 : i32
    return %c0_i32, %c0_i32_0 : i32, i32
  }
  func.func @transform_3(%arg0: i32) -> (i32, i32) {
    %c0_i32 = arith.constant 0 : i32
    %c0_i32_0 = arith.constant 0 : i32
    %c0_i32_1 = arith.constant 0 : i32
    return %c0_i32, %c0_i32_0 : i32, i32
  }
  func.func @transform_4(%arg0: i32) -> (i32, i32) {
    %c0_i32 = arith.constant 0 : i32
    %c0_i32_0 = arith.constant 0 : i32
    %c0_i32_1 = arith.constant 0 : i32
    return %c0_i32, %c0_i32_0 : i32, i32
  }
  func.func @transform_5(%arg0: i32) -> (i32, i32) {
    %c0_i32 = arith.constant 0 : i32
    %c0_i32_0 = arith.constant 0 : i32
    return %arg0, %c0_i32 : i32, i32
  }
}

module attributes {stable_mosaic.version = 11 : i64} {
  func.func @_mlp_kernel(%arg0: i32, %arg1: memref<8x128xf32, #tpu.memory_space<vmem>>, %arg2: memref<128x128xf32, #tpu.memory_space<vmem>>, %arg3: memref<8x128xf32, #tpu.memory_space<vmem>>, %arg4: memref<128x128xf32, #tpu.memory_space<vmem>>, %arg5: memref<8x128xf32, #tpu.memory_space<vmem>>, %arg6: memref<8x128xf32, #tpu.memory_space<vmem>>) attributes {dimension_semantics = [#tpu.dimension_semantics<parallel>], iteration_bounds = array<i64: 1>, scalar_prefetch = 0 : i64, scratch_operands = 0 : i64, tpu.core_type = #tpu.core_type<tc>, window_params = [{transform_indices = @transform_0, window_bounds = array<i64: 8, 128>}, {pipeline_mode = #tpu.pipeline_mode<synchronous>, transform_indices = @transform_1, window_bounds = array<i64: 128, 128>}, {pipeline_mode = #tpu.pipeline_mode<synchronous>, transform_indices = @transform_2, window_bounds = array<i64: 8, 128>}, {pipeline_mode = #tpu.pipeline_mode<synchronous>, transform_indices = @transform_3, window_bounds = array<i64: 128, 128>}, {pipeline_mode = #tpu.pipeline_mode<synchronous>, transform_indices = @transform_4, window_bounds = array<i64: 8, 128>}, {transform_indices = @transform_5, window_bounds = array<i64: 8, 128>}]} {
    %c0 = arith.constant 0 : index
    %c0_0 = arith.constant 0 : index
    %0 = vector.load %arg1[%c0, %c0_0] : memref<8x128xf32, #tpu.memory_space<vmem>>, vector<8x128xf32>
    %c0_1 = arith.constant 0 : index
    %c0_2 = arith.constant 0 : index
    %1 = vector.load %arg2[%c0_1, %c0_2] : memref<128x128xf32, #tpu.memory_space<vmem>>, vector<128x128xf32>
    %cst = arith.constant dense<0.000000e+00> : vector<8x128xf32>
    %2 = tpu.matmul %0, %1, %cst {dimension_numbers = #tpu.dot_dimension_numbers<[1], [0], [0], [1], [0, 0, 1, 1], [], []>} : vector<8x128xf32>, vector<128x128xf32>, vector<8x128xf32> -> vector<8x128xf32>
    %c0_3 = arith.constant 0 : index
    %c0_4 = arith.constant 0 : index
    %3 = vector.load %arg3[%c0_3, %c0_4] : memref<8x128xf32, #tpu.memory_space<vmem>>, vector<1x128xf32>
    %4 = vector.broadcast %3 : vector<1x128xf32> to vector<8x128xf32>
    %5 = arith.addf %2, %4 : vector<8x128xf32>
    %cst_5 = arith.constant 0.000000e+00 : f32
    %6 = vector.broadcast %cst_5 : f32 to vector<8x128xf32>
    %7 = arith.maximumf %5, %6 : vector<8x128xf32>
    %c0_6 = arith.constant 0 : index
    %c0_7 = arith.constant 0 : index
    %8 = vector.load %arg4[%c0_6, %c0_7] : memref<128x128xf32, #tpu.memory_space<vmem>>, vector<128x128xf32>
    %cst_8 = arith.constant dense<0.000000e+00> : vector<8x128xf32>
    %9 = tpu.matmul %7, %8, %cst_8 {dimension_numbers = #tpu.dot_dimension_numbers<[1], [0], [0], [1], [0, 0, 1, 1], [], []>} : vector<8x128xf32>, vector<128x128xf32>, vector<8x128xf32> -> vector<8x128xf32>
    %c0_9 = arith.constant 0 : index
    %c0_10 = arith.constant 0 : index
    %10 = vector.load %arg5[%c0_9, %c0_10] : memref<8x128xf32, #tpu.memory_space<vmem>>, vector<1x128xf32>
    %11 = vector.broadcast %10 : vector<1x128xf32> to vector<8x128xf32>
    %12 = arith.addf %9, %11 : vector<8x128xf32>
    %c0_11 = arith.constant 0 : index
    %c0_12 = arith.constant 0 : index
    %13 = vector.load %arg6[%c0_11, %c0_12] : memref<8x128xf32, #tpu.memory_space<vmem>>, vector<8x128xf32>
    tpu.vector_store %arg6[%c0_11, %c0_12], %12 {strides = array<i32>} : memref<8x128xf32, #tpu.memory_space<vmem>>, vector<8x128xf32>,
    return
  }
  func.func @transform_0(%arg0: i32) -> (i32, i32) {
    %c0_i32 = arith.constant 0 : i32
    %c0_i32_0 = arith.constant 0 : i32
    return %arg0, %c0_i32 : i32, i32
  }
  func.func @transform_1(%arg0: i32) -> (i32, i32) {
    %c0_i32 = arith.constant 0 : i32
    %c0_i32_0 = arith.constant 0 : i32
    %c0_i32_1 = arith.constant 0 : i32
    return %c0_i32, %c0_i32_0 : i32, i32
  }
  func.func @transform_2(%arg0: i32) -> (i32, i32) {
    %c0_i32 = arith.constant 0 : i32
    %c0_i32_0 = arith.constant 0 : i32
    %c0_i32_1 = arith.constant 0 : i32
    return %c0_i32, %c0_i32_0 : i32, i32
  }
  func.func @transform_3(%arg0: i32) -> (i32, i32) {
    %c0_i32 = arith.constant 0 : i32
    %c0_i32_0 = arith.constant 0 : i32
    %c0_i32_1 = arith.constant 0 : i32
    return %c0_i32, %c0_i32_0 : i32, i32
  }
  func.func @transform_4(%arg0: i32) -> (i32, i32) {
    %c0_i32 = arith.constant 0 : i32
    %c0_i32_0 = arith.constant 0 : i32
    %c0_i32_1 = arith.constant 0 : i32
    return %c0_i32, %c0_i32_0 : i32, i32
  }
  func.func @transform_5(%arg0: i32) -> (i32, i32) {
    %c0_i32 = arith.constant 0 : i32
    %c0_i32_0 = arith.constant 0 : i32
    return %arg0, %c0_i32 : i32, i32
  }
}

</mosaic_0001>

<llo_original>
// kernel: tpu_custom_call.1
$region0: #{tpu_custom_call.1}
  #allocation0 [shape = 'u32[]', space=smem, size = 0x4, offset = 0x4, fixed_abs, tag = 'smem constant byte address 0x4 - core index']
  #allocation1 [shape = 'u32[144,128]{1,0:T(1,128)}', space=vmem, size = 0x12000, scoped, tag = 'internal scratch']
  %s0 = inlined_call_operand.hbm [shape: f32[8,128], index: 0, kind: input, shape index: {}]
  %s1 = inlined_call_operand.hbm [shape: f32[128,128], index: 1, kind: input, shape index: {}]
  %s2 = inlined_call_operand.hbm [shape: f32[8,128], index: 2, kind: input, shape index: {}]
  %s3 = inlined_call_operand.hbm [shape: f32[128,128], index: 3, kind: input, shape index: {}]
  %s4 = inlined_call_operand.hbm [shape: f32[8,128], index: 4, kind: input, shape index: {}]
  %s5 = inlined_call_operand.hbm [shape: f32[8,128], index: 5, kind: output, shape index: {}]
  %s6 = sld [smem:[#allocation0]]
  $region50: #{tpu_custom_call.1} parent=0
    _
  %s8 = ssub.s32 1, %s6
  %s9 = scalar_select 0, %s8, %s6
  $region1: #{tpu_custom_call.1} parent=0
    #allocation2 [shape = 'u8[4096]{0}', space=vmem, size = 0x1000, scoped, tag = 'input window, operand 0, single buffered']
    #allocation3 [shape = 's32[1]{0}', space=sflag, size = 0x4, scoped, tag = 'scoped memory for tpu_custom_call.1']
    #allocation4 [shape = 's32[1]{0}', space=sflag, size = 0x4, scoped, tag = 'scoped memory for tpu_custom_call.1']
    #allocation5 [shape = 'u8[65536]{0}', space=vmem, size = 0x10000, scoped, tag = 'input window, operand 1, single buffered']
    #allocation6 [shape = 's32[1]{0}', space=sflag, size = 0x4, scoped, tag = 'scoped memory for tpu_custom_call.1']
    #allocation7 [shape = 'u8[4096]{0}', space=vmem, size = 0x1000, scoped, tag = 'input window, operand 2, single buffered']
    #allocation8 [shape = 'u8[65536]{0}', space=vmem, size = 0x10000, scoped, tag = 'input window, operand 3, single buffered']
    #allocation9 [shape = 's32[1]{0}', space=sflag, size = 0x4, scoped, tag = 'scoped memory for tpu_custom_call.1']
    #allocation10 [shape = 'u8[4096]{0}', space=vmem, size = 0x1000, scoped, tag = 'input window, operand 4, single buffered']
    #allocation11 [shape = 'u8[4096]{0}', space=vmem, size = 0x1000, scoped, tag = 'output window, operand 0, single buffered']
    %10 = vsyncpa [#allocation3], 0
    %11 = vsyncpa [#allocation6], 0
    %12 = vsyncpa [#allocation9], 0
    %13 = vsyncpa [#allocation4], 0
    // Predicated region
    $region2: #{tpu_custom_call.1} parent=1 // pred_check
      _
    $region3: #{tpu_custom_call.1} parent=1 // pred_check_branch
      %15 = sbr.rel (0) target = $region5
    $region4: #{tpu_custom_call.1} parent=1 // pred_region
      %s17 = ssub.s32 128, 128
      %18 = vsyncadd [#allocation3], %s17
      %s20 = sshll.u32 [#allocation2], 4
      %s21 = int_to_ptr.vmem [resolvable:$true] %s20
      %23 = dma.hbm_to_vmem [thread:$0]  %s0, 128, %s21, [#allocation3]
    $region5: #{tpu_custom_call.1} parent=1 // pred_fallthru
      _
    // Predicated region
    $region6: #{tpu_custom_call.1} parent=1 // pred_check
      _
    $region7: #{tpu_custom_call.1} parent=1 // pred_check_branch
      %25 = sbr.rel (0) target = $region9
    $region8: #{tpu_custom_call.1} parent=1 // pred_region
      %s27 = ssub.s32 2048, 2048
      %28 = vsyncadd [#allocation6], %s27
      %s29 = sshll.u32 [#allocation5], 4
      %s30 = int_to_ptr.vmem [resolvable:$true] %s29
      %35 = dma.hbm_to_vmem [thread:$0]  %s1, 2048, %s30, [#allocation6], 128, 128, 8
    $region9: #{tpu_custom_call.1} parent=1 // pred_fallthru
      _
    // Predicated region
    $region10: #{tpu_custom_call.1} parent=1 // pred_check
      _
    $region11: #{tpu_custom_call.1} parent=1 // pred_check_branch
      %37 = sbr.rel (0) target = $region13
    $region12: #{tpu_custom_call.1} parent=1 // pred_region
      %s39 = ssub.s32 128, 128
      %40 = vsyncadd [#allocation6], %s39
      %s42 = sshll.u32 [#allocation7], 4
      %s43 = int_to_ptr.vmem [resolvable:$true] %s42
      %45 = dma.hbm_to_vmem [thread:$0]  %s2, 128, %s43, [#allocation6]
    $region13: #{tpu_custom_call.1} parent=1 // pred_fallthru
      _
    // Predicated region
    $region14: #{tpu_custom_call.1} parent=1 // pred_check
      _
    $region15: #{tpu_custom_call.1} parent=1 // pred_check_branch
      %47 = sbr.rel (0) target = $region17
    $region16: #{tpu_custom_call.1} parent=1 // pred_region
      %s49 = ssub.s32 2048, 2048
      %50 = vsyncadd [#allocation9], %s49
      %s51 = sshll.u32 [#allocation8], 4
      %s52 = int_to_ptr.vmem [resolvable:$true] %s51
      %57 = dma.hbm_to_vmem [thread:$0]  %s3, 2048, %s52, [#allocation9], 128, 128, 8
    $region17: #{tpu_custom_call.1} parent=1 // pred_fallthru
      _
    // Predicated region
    $region18: #{tpu_custom_call.1} parent=1 // pred_check
      _
    $region19: #{tpu_custom_call.1} parent=1 // pred_check_branch
      %59 = sbr.rel (0) target = $region21
    $region20: #{tpu_custom_call.1} parent=1 // pred_region
      %s61 = ssub.s32 128, 128
      %62 = vsyncadd [#allocation9], %s61
      %s64 = sshll.u32 [#allocation10], 4
      %s65 = int_to_ptr.vmem [resolvable:$true] %s64
      %67 = dma.hbm_to_vmem [thread:$0]  %s4, 128, %s65, [#allocation9]
    $region21: #{tpu_custom_call.1} parent=1 // pred_fallthru
      _
    // Predicated region
    $region22: #{tpu_custom_call.1} parent=1 // pred_check
      _
    $region23: #{tpu_custom_call.1} parent=1 // pred_check_branch
      %69 = sbr.rel (0) target = $region25
    $region24: #{tpu_custom_call.1} parent=1 // pred_region
      %70 = dma.done [#allocation3], 128
    $region25: #{tpu_custom_call.1} parent=1 // pred_fallthru
      _
    // Predicated region
    $region26: #{tpu_custom_call.1} parent=1 // pred_check
      _
    $region27: #{tpu_custom_call.1} parent=1 // pred_check_branch
      %72 = sbr.rel (0) target = $region29
    $region28: #{tpu_custom_call.1} parent=1 // pred_region
      %73 = dma.done [#allocation6], 2048
    $region29: #{tpu_custom_call.1} parent=1 // pred_fallthru
      _
    // Predicated region
    $region30: #{tpu_custom_call.1} parent=1 // pred_check
      _
    $region31: #{tpu_custom_call.1} parent=1 // pred_check_branch
      %75 = sbr.rel (0) target = $region33
    $region32: #{tpu_custom_call.1} parent=1 // pred_region
      %76 = dma.done [#allocation6], 128
    $region33: #{tpu_custom_call.1} parent=1 // pred_fallthru
      _
    // Predicated region
    $region34: #{tpu_custom_call.1} parent=1 // pred_check
      _
    $region35: #{tpu_custom_call.1} parent=1 // pred_check_branch
      %78 = sbr.rel (0) target = $region37
    $region36: #{tpu_custom_call.1} parent=1 // pred_region
      %79 = dma.done [#allocation9], 2048
    $region37: #{tpu_custom_call.1} parent=1 // pred_fallthru
      _
    // Predicated region
    $region38: #{tpu_custom_call.1} parent=1 // pred_check
      _
    $region39: #{tpu_custom_call.1} parent=1 // pred_check_branch
      %81 = sbr.rel (0) target = $region41
    $region40: #{tpu_custom_call.1} parent=1 // pred_region
      %82 = dma.done [#allocation9], 128
    $region41: #{tpu_custom_call.1} parent=1 // pred_fallthru
      _
    %v83 = vld [vmem:[#allocation2] sm:$0xff]
    %v84 = vld [vmem:[#allocation5] sm:$0xff]
    %v85 = vld [vmem:[#allocation5 + $0x8] sm:$0xff]
    %v86 = vld [vmem:[#allocation5 + $0x10] sm:$0xff]
    %v87 = vld [vmem:[#allocation5 + $0x18] sm:$0xff]
    %v88 = vld [vmem:[#allocation5 + $0x20] sm:$0xff]
    %v89 = vld [vmem:[#allocation5 + $0x28] sm:$0xff]
    %v90 = vld [vmem:[#allocation5 + $0x30] sm:$0xff]
    %v91 = vld [vmem:[#allocation5 + $0x38] sm:$0xff]
    %v92 = vld [vmem:[#allocation5 + $0x40] sm:$0xff]
    %v93 = vld [vmem:[#allocation5 + $0x48] sm:$0xff]
    %v94 = vld [vmem:[#allocation5 + $0x50] sm:$0xff]
    %v95 = vld [vmem:[#allocation5 + $0x58] sm:$0xff]
    %v96 = vld [vmem:[#allocation5 + $0x60] sm:$0xff]
    %v97 = vld [vmem:[#allocation5 + $0x68] sm:$0xff]
    %v98 = vld [vmem:[#allocation5 + $0x70] sm:$0xff]
    %v99 = vld [vmem:[#allocation5 + $0x78] sm:$0xff]
    %v100 = vld [vmem:[#allocation7] sm:$0x1]
    %v101 = vlaneseq
    %v102 = vshrl.u32 %v101, 7
    %v103 = vsub.s32 0, %v102
    %v104 = vrot.slane %v100, %v103
    %105 = vmatprep.subr.mxu0 0.0
    %106 = vmatpush1.msra.mxu0 %v99
    %107 = vmatprep.subr.mxu0 0.0
    %108 = vmatpush1.msra.mxu0 %v98
    %109 = vmatprep.subr.mxu0 0.0
    %110 = vmatpush1.msra.mxu0 %v97
    %111 = vmatprep.subr.mxu0 0.0
    %112 = vmatpush1.msra.mxu0 %v96
    %113 = vmatprep.subr.mxu0 0.0
    %114 = vmatpush1.msra.mxu0 %v95
    %115 = vmatprep.subr.mxu0 0.0
    %116 = vmatpush1.msra.mxu0 %v94
    %117 = vmatprep.subr.mxu0 0.0
    %118 = vmatpush1.msra.mxu0 %v93
    %119 = vmatprep.subr.mxu0 0.0
    %120 = vmatpush1.msra.mxu0 %v92
    %121 = vmatprep.subr.mxu0 0.0
    %122 = vmatpush1.msra.mxu0 %v91
    %123 = vmatprep.subr.mxu0 0.0
    %124 = vmatpush1.msra.mxu0 %v90
    %125 = vmatprep.subr.mxu0 0.0
    %126 = vmatpush1.msra.mxu0 %v89
    %127 = vmatprep.subr.mxu0 0.0
    %128 = vmatpush1.msra.mxu0 %v88
    %129 = vmatprep.subr.mxu0 0.0
    %130 = vmatpush1.msra.mxu0 %v87
    %131 = vmatprep.subr.mxu0 0.0
    %132 = vmatpush1.msra.mxu0 %v86
    %133 = vmatprep.subr.mxu0 0.0
    %134 = vmatpush1.msra.mxu0 %v85
    %135 = vmatprep.subr.mxu0 0.0
    %136 = vmatpush1.msra.mxu0 %v84
    %137 = vmatprep.subr.mxu0 0.0
    %138 = vmatpush2.msra.mxu0 0.0
    %139 = vmatprep.subr.mxu0 0.0
    %140 = vmatpush2.msra.mxu0 0.0
    %141 = vmatprep.subr.mxu0 0.0
    %142 = vmatpush2.msra.mxu0 0.0
    %143 = vmatprep.subr.mxu0 0.0
    %144 = vmatpush2.msra.mxu0 0.0
    %145 = vmatprep.subr.mxu0 0.0
    %146 = vmatpush2.msra.mxu0 0.0
    %147 = vmatprep.subr.mxu0 0.0
    %148 = vmatpush2.msra.mxu0 0.0
    %149 = vmatprep.subr.mxu0 0.0
    %150 = vmatpush2.msra.mxu0 0.0
    %151 = vmatprep.subr.mxu0 0.0
    %152 = vmatpush2.msra.mxu0 0.0
    %153 = vmatprep.subr.mxu0 0.0
    %154 = vmatpush2.msra.mxu0 0.0
    %155 = vmatprep.subr.mxu0 0.0
    %156 = vmatpush2.msra.mxu0 0.0
    %157 = vmatprep.subr.mxu0 0.0
    %158 = vmatpush2.msra.mxu0 0.0
    %159 = vmatprep.subr.mxu0 0.0
    %160 = vmatpush2.msra.mxu0 0.0
    %161 = vmatprep.subr.mxu0 0.0
    %162 = vmatpush2.msra.mxu0 0.0
    %163 = vmatprep.subr.mxu0 0.0
    %164 = vmatpush2.msra.mxu0 0.0
    %165 = vmatprep.subr.mxu0 0.0
    %166 = vmatpush2.msra.mxu0 0.0
    %167 = vmatprep.subr.mxu0 0.0
    %168 = vmatpush2.msra.mxu0 0.0
    %169 = vmatprep.mubr.f32.mxu0 0.0
    %170 = vmatmul.mubr.f32.gmra.mxu0 %v83
    %v171 = vpop.f32.mrf.mxu0
    %v172 = vadd.f32 %v104, %v171
    %v173 = vpop.f32.mrf.mxu0
    %174 = vdwg.mxu0
    %v175 = vmax.f32 %v172, 0.0
    %v176 = vld [vmem:[#allocation8] sm:$0xff]
    %v177 = vld [vmem:[#allocation8 + $0x8] sm:$0xff]
    %v178 = vld [vmem:[#allocation8 + $0x10] sm:$0xff]
    %v179 = vld [vmem:[#allocation8 + $0x18] sm:$0xff]
    %v180 = vld [vmem:[#allocation8 + $0x20] sm:$0xff]
    %v181 = vld [vmem:[#allocation8 + $0x28] sm:$0xff]
    %v182 = vld [vmem:[#allocation8 + $0x30] sm:$0xff]
    %v183 = vld [vmem:[#allocation8 + $0x38] sm:$0xff]
    %v184 = vld [vmem:[#allocation8 + $0x40] sm:$0xff]
    %v185 = vld [vmem:[#allocation8 + $0x48] sm:$0xff]
    %v186 = vld [vmem:[#allocation8 + $0x50] sm:$0xff]
    %v187 = vld [vmem:[#allocation8 + $0x58] sm:$0xff]
    %v188 = vld [vmem:[#allocation8 + $0x60] sm:$0xff]
    %v189 = vld [vmem:[#allocation8 + $0x68] sm:$0xff]
    %v190 = vld [vmem:[#allocation8 + $0x70] sm:$0xff]
    %v191 = vld [vmem:[#allocation8 + $0x78] sm:$0xff]
    %v192 = vld [vmem:[#allocation10] sm:$0x1]
    %v193 = vlaneseq
    %v194 = vshrl.u32 %v193, 7
    %v195 = vsub.s32 0, %v194
    %v196 = vrot.slane %v192, %v195
    %197 = vmatprep.subr.mxu0 0.0
    %198 = vmatpush1.msra.mxu0 %v191
    %199 = vmatprep.subr.mxu0 0.0
    %200 = vmatpush1.msra.mxu0 %v190
    %201 = vmatprep.subr.mxu0 0.0
    %202 = vmatpush1.msra.mxu0 %v189
    %203 = vmatprep.subr.mxu0 0.0
    %204 = vmatpush1.msra.mxu0 %v188
    %205 = vmatprep.subr.mxu0 0.0
    %206 = vmatpush1.msra.mxu0 %v187
    %207 = vmatprep.subr.mxu0 0.0
    %208 = vmatpush1.msra.mxu0 %v186
    %209 = vmatprep.subr.mxu0 0.0
    %210 = vmatpush1.msra.mxu0 %v185
    %211 = vmatprep.subr.mxu0 0.0
    %212 = vmatpush1.msra.mxu0 %v184
    %213 = vmatprep.subr.mxu0 0.0
    %214 = vmatpush1.msra.mxu0 %v183
    %215 = vmatprep.subr.mxu0 0.0
    %216 = vmatpush1.msra.mxu0 %v182
    %217 = vmatprep.subr.mxu0 0.0
    %218 = vmatpush1.msra.mxu0 %v181
    %219 = vmatprep.subr.mxu0 0.0
    %220 = vmatpush1.msra.mxu0 %v180
    %221 = vmatprep.subr.mxu0 0.0
    %222 = vmatpush1.msra.mxu0 %v179
    %223 = vmatprep.subr.mxu0 0.0
    %224 = vmatpush1.msra.mxu0 %v178
    %225 = vmatprep.subr.mxu0 0.0
    %226 = vmatpush1.msra.mxu0 %v177
    %227 = vmatprep.subr.mxu0 0.0
    %228 = vmatpush1.msra.mxu0 %v176
    %229 = vmatprep.subr.mxu0 0.0
    %230 = vmatpush2.msra.mxu0 0.0
    %231 = vmatprep.subr.mxu0 0.0
    %232 = vmatpush2.msra.mxu0 0.0
    %233 = vmatprep.subr.mxu0 0.0
    %234 = vmatpush2.msra.mxu0 0.0
    %235 = vmatprep.subr.mxu0 0.0
    %236 = vmatpush2.msra.mxu0 0.0
    %237 = vmatprep.subr.mxu0 0.0
    %238 = vmatpush2.msra.mxu0 0.0
    %239 = vmatprep.subr.mxu0 0.0
    %240 = vmatpush2.msra.mxu0 0.0
    %241 = vmatprep.subr.mxu0 0.0
    %242 = vmatpush2.msra.mxu0 0.0
    %243 = vmatprep.subr.mxu0 0.0
    %244 = vmatpush2.msra.mxu0 0.0
    %245 = vmatprep.subr.mxu0 0.0
    %246 = vmatpush2.msra.mxu0 0.0
    %247 = vmatprep.subr.mxu0 0.0
    %248 = vmatpush2.msra.mxu0 0.0
    %249 = vmatprep.subr.mxu0 0.0
    %250 = vmatpush2.msra.mxu0 0.0
    %251 = vmatprep.subr.mxu0 0.0
    %252 = vmatpush2.msra.mxu0 0.0
    %253 = vmatprep.subr.mxu0 0.0
    %254 = vmatpush2.msra.mxu0 0.0
    %255 = vmatprep.subr.mxu0 0.0
    %256 = vmatpush2.msra.mxu0 0.0
    %257 = vmatprep.subr.mxu0 0.0
    %258 = vmatpush2.msra.mxu0 0.0
    %259 = vmatprep.subr.mxu0 0.0
    %260 = vmatpush2.msra.mxu0 0.0
    %261 = vmatprep.mubr.f32.mxu0 0.0
    %262 = vmatmul.mubr.f32.gmra.mxu0 %v175
    %v263 = vpop.f32.mrf.mxu0
    %v264 = vadd.f32 %v196, %v263
    %v265 = vpop.f32.mrf.mxu0
    %266 = vdwg.mxu0
    %267 = vst [vmem:[#allocation11] sm:$0xff] %v264
    // Predicated region
    $region42: #{tpu_custom_call.1} parent=1 // pred_check
      _
    $region43: #{tpu_custom_call.1} parent=1 // pred_check_branch
      %269 = sbr.rel (0) target = $region45
    $region44: #{tpu_custom_call.1} parent=1 // pred_region
      %s271 = ssub.s32 128, 128
      %272 = vsyncadd [#allocation4], %s271
      %s274 = sshll.u32 [#allocation11], 4
      %s275 = int_to_ptr.vmem [resolvable:$true] %s274
      %277 = dma.vmem_to_hbm [thread:$0]  %s275, 128, %s5, [#allocation4]
    $region45: #{tpu_custom_call.1} parent=1 // pred_fallthru
      _
    // Predicated region
    $region46: #{tpu_custom_call.1} parent=1 // pred_check
      _
    $region47: #{tpu_custom_call.1} parent=1 // pred_check_branch
      %279 = sbr.rel (0) target = $region49
    $region48: #{tpu_custom_call.1} parent=1 // pred_region
      %280 = dma.done [#allocation4], 128
    $region49: #{tpu_custom_call.1} parent=1 // pred_fallthru
      _
    %281 = vsyncpa [#allocation3], 1
    %282 = vsyncpa [#allocation6], 1
    %283 = vsyncpa [#allocation9], 1
    %284 = vsyncpa [#allocation4], 1

// kernel: tpu_custom_call.1
$region0: #{tpu_custom_call.1}
  #allocation0 [shape = 'u32[]', space=smem, size = 0x4, offset = 0x4, fixed_abs, tag = 'smem constant byte address 0x4 - core index']
  #allocation1 [shape = 'u32[144,128]{1,0:T(1,128)}', space=vmem, size = 0x12000, scoped, tag = 'internal scratch']
  %s0 = inlined_call_operand.hbm [shape: f32[8,128], index: 0, kind: input, shape index: {}]
  %s1 = inlined_call_operand.hbm [shape: f32[128,128], index: 1, kind: input, shape index: {}]
  %s2 = inlined_call_operand.hbm [shape: f32[8,128], index: 2, kind: input, shape index: {}]
  %s3 = inlined_call_operand.hbm [shape: f32[128,128], index: 3, kind: input, shape index: {}]
  %s4 = inlined_call_operand.hbm [shape: f32[8,128], index: 4, kind: input, shape index: {}]
  %s5 = inlined_call_operand.hbm [shape: f32[8,128], index: 5, kind: output, shape index: {}]
  %s6 = sld [smem:[#allocation0]]
  $region50: #{tpu_custom_call.1} parent=0
    _
  %s8 = ssub.s32 1, %s6
  %s9 = scalar_select 0, %s8, %s6
  $region1: #{tpu_custom_call.1} parent=0
    #allocation2 [shape = 'u8[4096]{0}', space=vmem, size = 0x1000, scoped, tag = 'input window, operand 0, single buffered']
    #allocation3 [shape = 's32[1]{0}', space=sflag, size = 0x4, scoped, tag = 'scoped memory for tpu_custom_call.1']
    #allocation4 [shape = 's32[1]{0}', space=sflag, size = 0x4, scoped, tag = 'scoped memory for tpu_custom_call.1']
    #allocation5 [shape = 'u8[65536]{0}', space=vmem, size = 0x10000, scoped, tag = 'input window, operand 1, single buffered']
    #allocation6 [shape = 's32[1]{0}', space=sflag, size = 0x4, scoped, tag = 'scoped memory for tpu_custom_call.1']
    #allocation7 [shape = 'u8[4096]{0}', space=vmem, size = 0x1000, scoped, tag = 'input window, operand 2, single buffered']
    #allocation8 [shape = 'u8[65536]{0}', space=vmem, size = 0x10000, scoped, tag = 'input window, operand 3, single buffered']
    #allocation9 [shape = 's32[1]{0}', space=sflag, size = 0x4, scoped, tag = 'scoped memory for tpu_custom_call.1']
    #allocation10 [shape = 'u8[4096]{0}', space=vmem, size = 0x1000, scoped, tag = 'input window, operand 4, single buffered']
    #allocation11 [shape = 'u8[4096]{0}', space=vmem, size = 0x1000, scoped, tag = 'output window, operand 0, single buffered']
    %10 = vsyncpa [#allocation3], 0
    %11 = vsyncpa [#allocation6], 0
    %12 = vsyncpa [#allocation9], 0
    %13 = vsyncpa [#allocation4], 0
    // Predicated region
    $region2: #{tpu_custom_call.1} parent=1 // pred_check
      _
    $region3: #{tpu_custom_call.1} parent=1 // pred_check_branch
      %15 = sbr.rel (0) target = $region5
    $region4: #{tpu_custom_call.1} parent=1 // pred_region
      %s17 = ssub.s32 128, 128
      %18 = vsyncadd [#allocation3], %s17
      %s20 = sshll.u32 [#allocation2], 4
      %s21 = int_to_ptr.vmem [resolvable:$true] %s20
      %23 = dma.hbm_to_vmem [thread:$0]  %s0, 128, %s21, [#allocation3]
    $region5: #{tpu_custom_call.1} parent=1 // pred_fallthru
      _
    // Predicated region
    $region6: #{tpu_custom_call.1} parent=1 // pred_check
      _
    $region7: #{tpu_custom_call.1} parent=1 // pred_check_branch
      %25 = sbr.rel (0) target = $region9
    $region8: #{tpu_custom_call.1} parent=1 // pred_region
      %s27 = ssub.s32 2048, 2048
      %28 = vsyncadd [#allocation6], %s27
      %s29 = sshll.u32 [#allocation5], 4
      %s30 = int_to_ptr.vmem [resolvable:$true] %s29
      %35 = dma.hbm_to_vmem [thread:$0]  %s1, 2048, %s30, [#allocation6], 128, 128, 8
    $region9: #{tpu_custom_call.1} parent=1 // pred_fallthru
      _
    // Predicated region
    $region10: #{tpu_custom_call.1} parent=1 // pred_check
      _
    $region11: #{tpu_custom_call.1} parent=1 // pred_check_branch
      %37 = sbr.rel (0) target = $region13
    $region12: #{tpu_custom_call.1} parent=1 // pred_region
      %s39 = ssub.s32 128, 128
      %40 = vsyncadd [#allocation6], %s39
      %s42 = sshll.u32 [#allocation7], 4
      %s43 = int_to_ptr.vmem [resolvable:$true] %s42
      %45 = dma.hbm_to_vmem [thread:$0]  %s2, 128, %s43, [#allocation6]
    $region13: #{tpu_custom_call.1} parent=1 // pred_fallthru
      _
    // Predicated region
    $region14: #{tpu_custom_call.1} parent=1 // pred_check
      _
    $region15: #{tpu_custom_call.1} parent=1 // pred_check_branch
      %47 = sbr.rel (0) target = $region17
    $region16: #{tpu_custom_call.1} parent=1 // pred_region
      %s49 = ssub.s32 2048, 2048
      %50 = vsyncadd [#allocation9], %s49
      %s51 = sshll.u32 [#allocation8], 4
      %s52 = int_to_ptr.vmem [resolvable:$true] %s51
      %57 = dma.hbm_to_vmem [thread:$0]  %s3, 2048, %s52, [#allocation9], 128, 128, 8
    $region17: #{tpu_custom_call.1} parent=1 // pred_fallthru
      _
    // Predicated region
    $region18: #{tpu_custom_call.1} parent=1 // pred_check
      _
    $region19: #{tpu_custom_call.1} parent=1 // pred_check_branch
      %59 = sbr.rel (0) target = $region21
    $region20: #{tpu_custom_call.1} parent=1 // pred_region
      %s61 = ssub.s32 128, 128
      %62 = vsyncadd [#allocation9], %s61
      %s64 = sshll.u32 [#allocation10], 4
      %s65 = int_to_ptr.vmem [resolvable:$true] %s64
      %67 = dma.hbm_to_vmem [thread:$0]  %s4, 128, %s65, [#allocation9]
    $region21: #{tpu_custom_call.1} parent=1 // pred_fallthru
      _
    // Predicated region
    $region22: #{tpu_custom_call.1} parent=1 // pred_check
      _
    $region23: #{tpu_custom_call.1} parent=1 // pred_check_branch
      %69 = sbr.rel (0) target = $region25
    $region24: #{tpu_custom_call.1} parent=1 // pred_region
      %70 = dma.done [#allocation3], 128
    $region25: #{tpu_custom_call.1} parent=1 // pred_fallthru
      _
    // Predicated region
    $region26: #{tpu_custom_call.1} parent=1 // pred_check
      _
    $region27: #{tpu_custom_call.1} parent=1 // pred_check_branch
      %72 = sbr.rel (0) target = $region29
    $region28: #{tpu_custom_call.1} parent=1 // pred_region
      %73 = dma.done [#allocation6], 2048
    $region29: #{tpu_custom_call.1} parent=1 // pred_fallthru
      _
    // Predicated region
    $region30: #{tpu_custom_call.1} parent=1 // pred_check
      _
    $region31: #{tpu_custom_call.1} parent=1 // pred_check_branch
      %75 = sbr.rel (0) target = $region33
    $region32: #{tpu_custom_call.1} parent=1 // pred_region
      %76 = dma.done [#allocation6], 128
    $region33: #{tpu_custom_call.1} parent=1 // pred_fallthru
      _
    // Predicated region
    $region34: #{tpu_custom_call.1} parent=1 // pred_check
      _
    $region35: #{tpu_custom_call.1} parent=1 // pred_check_branch
      %78 = sbr.rel (0) target = $region37
    $region36: #{tpu_custom_call.1} parent=1 // pred_region
      %79 = dma.done [#allocation9], 2048
    $region37: #{tpu_custom_call.1} parent=1 // pred_fallthru
      _
    // Predicated region
    $region38: #{tpu_custom_call.1} parent=1 // pred_check
      _
    $region39: #{tpu_custom_call.1} parent=1 // pred_check_branch
      %81 = sbr.rel (0) target = $region41
    $region40: #{tpu_custom_call.1} parent=1 // pred_region
      %82 = dma.done [#allocation9], 128
    $region41: #{tpu_custom_call.1} parent=1 // pred_fallthru
      _
    %v83 = vld [vmem:[#allocation2] sm:$0xff]
    %v84 = vld [vmem:[#allocation5] sm:$0xff]
    %v85 = vld [vmem:[#allocation5 + $0x8] sm:$0xff]
    %v86 = vld [vmem:[#allocation5 + $0x10] sm:$0xff]
    %v87 = vld [vmem:[#allocation5 + $0x18] sm:$0xff]
    %v88 = vld [vmem:[#allocation5 + $0x20] sm:$0xff]
    %v89 = vld [vmem:[#allocation5 + $0x28] sm:$0xff]
    %v90 = vld [vmem:[#allocation5 + $0x30] sm:$0xff]
    %v91 = vld [vmem:[#allocation5 + $0x38] sm:$0xff]
    %v92 = vld [vmem:[#allocation5 + $0x40] sm:$0xff]
    %v93 = vld [vmem:[#allocation5 + $0x48] sm:$0xff]
    %v94 = vld [vmem:[#allocation5 + $0x50] sm:$0xff]
    %v95 = vld [vmem:[#allocation5 + $0x58] sm:$0xff]
    %v96 = vld [vmem:[#allocation5 + $0x60] sm:$0xff]
    %v97 = vld [vmem:[#allocation5 + $0x68] sm:$0xff]
    %v98 = vld [vmem:[#allocation5 + $0x70] sm:$0xff]
    %v99 = vld [vmem:[#allocation5 + $0x78] sm:$0xff]
    %v100 = vld [vmem:[#allocation7] sm:$0x1]
    %v101 = vlaneseq
    %v102 = vshrl.u32 %v101, 7
    %v103 = vsub.s32 0, %v102
    %v104 = vrot.slane %v100, %v103
    %105 = vmatprep.subr.mxu0 0.0
    %106 = vmatpush1.msra.mxu0 %v99
    %107 = vmatprep.subr.mxu0 0.0
    %108 = vmatpush1.msra.mxu0 %v98
    %109 = vmatprep.subr.mxu0 0.0
    %110 = vmatpush1.msra.mxu0 %v97
    %111 = vmatprep.subr.mxu0 0.0
    %112 = vmatpush1.msra.mxu0 %v96
    %113 = vmatprep.subr.mxu0 0.0
    %114 = vmatpush1.msra.mxu0 %v95
    %115 = vmatprep.subr.mxu0 0.0
    %116 = vmatpush1.msra.mxu0 %v94
    %117 = vmatprep.subr.mxu0 0.0
    %118 = vmatpush1.msra.mxu0 %v93
    %119 = vmatprep.subr.mxu0 0.0
    %120 = vmatpush1.msra.mxu0 %v92
    %121 = vmatprep.subr.mxu0 0.0
    %122 = vmatpush1.msra.mxu0 %v91
    %123 = vmatprep.subr.mxu0 0.0
    %124 = vmatpush1.msra.mxu0 %v90
    %125 = vmatprep.subr.mxu0 0.0
    %126 = vmatpush1.msra.mxu0 %v89
    %127 = vmatprep.subr.mxu0 0.0
    %128 = vmatpush1.msra.mxu0 %v88
    %129 = vmatprep.subr.mxu0 0.0
    %130 = vmatpush1.msra.mxu0 %v87
    %131 = vmatprep.subr.mxu0 0.0
    %132 = vmatpush1.msra.mxu0 %v86
    %133 = vmatprep.subr.mxu0 0.0
    %134 = vmatpush1.msra.mxu0 %v85
    %135 = vmatprep.subr.mxu0 0.0
    %136 = vmatpush1.msra.mxu0 %v84
    %137 = vmatprep.subr.mxu0 0.0
    %138 = vmatpush2.msra.mxu0 0.0
    %139 = vmatprep.subr.mxu0 0.0
    %140 = vmatpush2.msra.mxu0 0.0
    %141 = vmatprep.subr.mxu0 0.0
    %142 = vmatpush2.msra.mxu0 0.0
    %143 = vmatprep.subr.mxu0 0.0
    %144 = vmatpush2.msra.mxu0 0.0
    %145 = vmatprep.subr.mxu0 0.0
    %146 = vmatpush2.msra.mxu0 0.0
    %147 = vmatprep.subr.mxu0 0.0
    %148 = vmatpush2.msra.mxu0 0.0
    %149 = vmatprep.subr.mxu0 0.0
    %150 = vmatpush2.msra.mxu0 0.0
    %151 = vmatprep.subr.mxu0 0.0
    %152 = vmatpush2.msra.mxu0 0.0
    %153 = vmatprep.subr.mxu0 0.0
    %154 = vmatpush2.msra.mxu0 0.0
    %155 = vmatprep.subr.mxu0 0.0
    %156 = vmatpush2.msra.mxu0 0.0
    %157 = vmatprep.subr.mxu0 0.0
    %158 = vmatpush2.msra.mxu0 0.0
    %159 = vmatprep.subr.mxu0 0.0
    %160 = vmatpush2.msra.mxu0 0.0
    %161 = vmatprep.subr.mxu0 0.0
    %162 = vmatpush2.msra.mxu0 0.0
    %163 = vmatprep.subr.mxu0 0.0
    %164 = vmatpush2.msra.mxu0 0.0
    %165 = vmatprep.subr.mxu0 0.0
    %166 = vmatpush2.msra.mxu0 0.0
    %167 = vmatprep.subr.mxu0 0.0
    %168 = vmatpush2.msra.mxu0 0.0
    %169 = vmatprep.mubr.f32.mxu0 0.0
    %170 = vmatmul.mubr.f32.gmra.mxu0 %v83
    %v171 = vpop.f32.mrf.mxu0
    %v172 = vadd.f32 %v104, %v171
    %v173 = vpop.f32.mrf.mxu0
    %174 = vdwg.mxu0
    %v175 = vmax.f32 %v172, 0.0
    %v176 = vld [vmem:[#allocation8] sm:$0xff]
    %v177 = vld [vmem:[#allocation8 + $0x8] sm:$0xff]
    %v178 = vld [vmem:[#allocation8 + $0x10] sm:$0xff]
    %v179 = vld [vmem:[#allocation8 + $0x18] sm:$0xff]
    %v180 = vld [vmem:[#allocation8 + $0x20] sm:$0xff]
    %v181 = vld [vmem:[#allocation8 + $0x28] sm:$0xff]
    %v182 = vld [vmem:[#allocation8 + $0x30] sm:$0xff]
    %v183 = vld [vmem:[#allocation8 + $0x38] sm:$0xff]
    %v184 = vld [vmem:[#allocation8 + $0x40] sm:$0xff]
    %v185 = vld [vmem:[#allocation8 + $0x48] sm:$0xff]
    %v186 = vld [vmem:[#allocation8 + $0x50] sm:$0xff]
    %v187 = vld [vmem:[#allocation8 + $0x58] sm:$0xff]
    %v188 = vld [vmem:[#allocation8 + $0x60] sm:$0xff]
    %v189 = vld [vmem:[#allocation8 + $0x68] sm:$0xff]
    %v190 = vld [vmem:[#allocation8 + $0x70] sm:$0xff]
    %v191 = vld [vmem:[#allocation8 + $0x78] sm:$0xff]
    %v192 = vld [vmem:[#allocation10] sm:$0x1]
    %v193 = vlaneseq
    %v194 = vshrl.u32 %v193, 7
    %v195 = vsub.s32 0, %v194
    %v196 = vrot.slane %v192, %v195
    %197 = vmatprep.subr.mxu0 0.0
    %198 = vmatpush1.msra.mxu0 %v191
    %199 = vmatprep.subr.mxu0 0.0
    %200 = vmatpush1.msra.mxu0 %v190
    %201 = vmatprep.subr.mxu0 0.0
    %202 = vmatpush1.msra.mxu0 %v189
    %203 = vmatprep.subr.mxu0 0.0
    %204 = vmatpush1.msra.mxu0 %v188
    %205 = vmatprep.subr.mxu0 0.0
    %206 = vmatpush1.msra.mxu0 %v187
    %207 = vmatprep.subr.mxu0 0.0
    %208 = vmatpush1.msra.mxu0 %v186
    %209 = vmatprep.subr.mxu0 0.0
    %210 = vmatpush1.msra.mxu0 %v185
    %211 = vmatprep.subr.mxu0 0.0
    %212 = vmatpush1.msra.mxu0 %v184
    %213 = vmatprep.subr.mxu0 0.0
    %214 = vmatpush1.msra.mxu0 %v183
    %215 = vmatprep.subr.mxu0 0.0
    %216 = vmatpush1.msra.mxu0 %v182
    %217 = vmatprep.subr.mxu0 0.0
    %218 = vmatpush1.msra.mxu0 %v181
    %219 = vmatprep.subr.mxu0 0.0
    %220 = vmatpush1.msra.mxu0 %v180
    %221 = vmatprep.subr.mxu0 0.0
    %222 = vmatpush1.msra.mxu0 %v179
    %223 = vmatprep.subr.mxu0 0.0
    %224 = vmatpush1.msra.mxu0 %v178
    %225 = vmatprep.subr.mxu0 0.0
    %226 = vmatpush1.msra.mxu0 %v177
    %227 = vmatprep.subr.mxu0 0.0
    %228 = vmatpush1.msra.mxu0 %v176
    %229 = vmatprep.subr.mxu0 0.0
    %230 = vmatpush2.msra.mxu0 0.0
    %231 = vmatprep.subr.mxu0 0.0
    %232 = vmatpush2.msra.mxu0 0.0
    %233 = vmatprep.subr.mxu0 0.0
    %234 = vmatpush2.msra.mxu0 0.0
    %235 = vmatprep.subr.mxu0 0.0
    %236 = vmatpush2.msra.mxu0 0.0
    %237 = vmatprep.subr.mxu0 0.0
    %238 = vmatpush2.msra.mxu0 0.0
    %239 = vmatprep.subr.mxu0 0.0
    %240 = vmatpush2.msra.mxu0 0.0
    %241 = vmatprep.subr.mxu0 0.0
    %242 = vmatpush2.msra.mxu0 0.0
    %243 = vmatprep.subr.mxu0 0.0
    %244 = vmatpush2.msra.mxu0 0.0
    %245 = vmatprep.subr.mxu0 0.0
    %246 = vmatpush2.msra.mxu0 0.0
    %247 = vmatprep.subr.mxu0 0.0
    %248 = vmatpush2.msra.mxu0 0.0
    %249 = vmatprep.subr.mxu0 0.0
    %250 = vmatpush2.msra.mxu0 0.0
    %251 = vmatprep.subr.mxu0 0.0
    %252 = vmatpush2.msra.mxu0 0.0
    %253 = vmatprep.subr.mxu0 0.0
    %254 = vmatpush2.msra.mxu0 0.0
    %255 = vmatprep.subr.mxu0 0.0
    %256 = vmatpush2.msra.mxu0 0.0
    %257 = vmatprep.subr.mxu0 0.0
    %258 = vmatpush2.msra.mxu0 0.0
    %259 = vmatprep.subr.mxu0 0.0
    %260 = vmatpush2.msra.mxu0 0.0
    %261 = vmatprep.mubr.f32.mxu0 0.0
    %262 = vmatmul.mubr.f32.gmra.mxu0 %v175
    %v263 = vpop.f32.mrf.mxu0
    %v264 = vadd.f32 %v196, %v263
    %v265 = vpop.f32.mrf.mxu0
    %266 = vdwg.mxu0
    %267 = vst [vmem:[#allocation11] sm:$0xff] %v264
    // Predicated region
    $region42: #{tpu_custom_call.1} parent=1 // pred_check
      _
    $region43: #{tpu_custom_call.1} parent=1 // pred_check_branch
      %269 = sbr.rel (0) target = $region45
    $region44: #{tpu_custom_call.1} parent=1 // pred_region
      %s271 = ssub.s32 128, 128
      %272 = vsyncadd [#allocation4], %s271
      %s274 = sshll.u32 [#allocation11], 4
      %s275 = int_to_ptr.vmem [resolvable:$true] %s274
      %277 = dma.vmem_to_hbm [thread:$0]  %s275, 128, %s5, [#allocation4]
    $region45: #{tpu_custom_call.1} parent=1 // pred_fallthru
      _
    // Predicated region
    $region46: #{tpu_custom_call.1} parent=1 // pred_check
      _
    $region47: #{tpu_custom_call.1} parent=1 // pred_check_branch
      %279 = sbr.rel (0) target = $region49
    $region48: #{tpu_custom_call.1} parent=1 // pred_region
      %280 = dma.done [#allocation4], 128
    $region49: #{tpu_custom_call.1} parent=1 // pred_fallthru
      _
    %281 = vsyncpa [#allocation3], 1
    %282 = vsyncpa [#allocation6], 1
    %283 = vsyncpa [#allocation9], 1
    %284 = vsyncpa [#allocation4], 1

</llo_original>
